<compile_context>
chip_gen: v6e
topology: v6e:2x2x1
jax: 0.10.0
libtpu: 0.0.40
codegen_flags: <defaults>
</compile_context>

<pallas_src>
import math
from functools import partial

import jax
import jax.numpy as jnp
from jax.experimental import pallas as pl
from jax.experimental.pallas import tpu as pltpu


# ----------------------------------------------------------------------------
# small helpers
# ----------------------------------------------------------------------------
_LN_EPS = 1e-6          # VisionTransformer uses partial(nn.LayerNorm, eps=1e-6)
_GELU_C = math.sqrt(2.0 / math.pi)
_MIB = 1024 * 1024


def _round_up(x, m):
    return ((x + m - 1) // m) * m


def _layernorm(x, w, b, eps=_LN_EPS):
    # torch.nn.LayerNorm semantics (biased variance, eps inside sqrt); rsqrt -> EUP.
    mu = jnp.mean(x, axis=-1, keepdims=True)
    var = jnp.mean(jnp.square(x - mu), axis=-1, keepdims=True)
    return (x - mu) * jax.lax.rsqrt(var + eps) * w + b


def _gelu(x):
    # tanh-approximate GELU (EUP slot); accepted ~1e-3 rel deviation vs torch erf GELU.
    return 0.5 * x * (1.0 + jnp.tanh(_GELU_C * (x + 0.044715 * x * x * x)))


def _full(shape):
    # BlockSpec covering the whole (small, replicated) array regardless of grid rank.
    nd = len(shape)
    return pl.BlockSpec(shape, lambda *g, _nd=nd: (0,) * _nd)


def _vmem_cap_bytes():
    # 75% of physical VMEM when the runtime can tell us (128 MiB on v5e/v6e,
    # 64 MiB on v7x); otherwise a 48 MiB fallback that is safe on every generation.
    try:
        return int(0.75 * pltpu.get_tpu_info().vmem_capacity_bytes)
    except Exception:  # pragma: no cover - defensive
        return 48 * _MIB


def _cparams(dim_sems, working_bytes):
    vmem = int(min(max(int(working_bytes) + 8 * _MIB, 32 * _MIB), _vmem_cap_bytes()))
    return pltpu.CompilerParams(dimension_semantics=dim_sems, vmem_limit_bytes=vmem)


# ----------------------------------------------------------------------------
# kernel 1: (M,K)@(K,N)+bias, row-tiled  -> patch-embedding Conv2d
# ----------------------------------------------------------------------------
def _matmul_bias_kernel(x_ref, w_ref, b_ref, o_ref):
    o_ref[...] = (
        jnp.dot(x_ref[...], w_ref[...], preferred_element_type=jnp.float32) + b_ref[...]
    )


def matmul_bias(x, w, b):
    """x:(M,K) bf16, w:(K,N) bf16, b:(1,N) f32 -> (M,N) f32 (row-tiled, padded M)."""
    M, K = x.shape
    N = w.shape[1]
    # Fixed 256-row tiles (full M-dim of the v6e/v7x 256x256 MXU; two passes on v5e)
    # with zero-padded rows, instead of a divisor-based tile picker that could
    # degrade to 4/8-row tiles for M = B * num_patches.
    tm = 256 if M >= 256 else _round_up(M, 16)
    m_pad = _round_up(M, tm)
    if m_pad != M:
        x = jnp.pad(x, ((0, m_pad - M), (0, 0)))
    working = (2 * tm * K * x.dtype.itemsize        # double-buffered x tiles
               + 2 * K * N * w.dtype.itemsize       # resident weight (+headroom)
               + 2 * tm * N * 4 + N * 4)            # output tiles + bias
    cost = pl.CostEstimate(
        flops=2 * m_pad * K * N,
        transcendentals=0,
        bytes_accessed=m_pad * K * x.dtype.itemsize + K * N * w.dtype.itemsize
        + m_pad * N * 4,
    )
    out = pl.pallas_call(
        _matmul_bias_kernel,
        out_shape=jax.ShapeDtypeStruct((m_pad, N), jnp.float32),
        grid=(m_pad // tm,),
        in_specs=[
            pl.BlockSpec((tm, K), lambda i: (i, 0)),
            pl.BlockSpec((K, N), lambda i: (0, 0)),
            pl.BlockSpec((1, N), lambda i: (0, 0)),
        ],
        out_specs=pl.BlockSpec((tm, N), lambda i: (i, 0)),
        compiler_params=_cparams(("parallel",), working),
        cost_estimate=cost,
    )(x, w, b)
    return out[:M] if m_pad != M else out


# ----------------------------------------------------------------------------
# kernel 2: one fused transformer Block
#   LN1 -> QKV -> per-head SDPA -> proj -> residual -> LN2 -> fc1 -> GELU -> fc2 -> residual
# one batch element per grid step; all weights resident (constant index_maps).
# ----------------------------------------------------------------------------
def _block_kernel(x_ref, ln1_w_ref, ln1_b_ref, qkv_w_ref, qkv_b_ref,
                  proj_w_ref, proj_b_ref, ln2_w_ref, ln2_b_ref,
                  fc1_w_ref, fc1_b_ref, fc2_w_ref, fc2_b_ref,
                  o_ref, attn_ref, *, num_heads, scale, n_valid):
    x = x_ref[0]                                       # (N, C) f32
    N, C = x.shape
    hd = C // num_heads

    # ---------------- attention half ----------------
    xn = _layernorm(x, ln1_w_ref[...], ln1_b_ref[...])
    qkv = jnp.dot(xn.astype(jnp.bfloat16), qkv_w_ref[...],
                  preferred_element_type=jnp.float32) + qkv_b_ref[...]      # (N, 3C)

    key_mask = None
    if n_valid < N:                                    # mask padded key columns
        key_mask = jax.lax.broadcasted_iota(jnp.int32, (1, N), 1) >= n_valid

    # Per-head loop on static lane slices of the (N,3C) qkv tensor; each head's
    # context goes straight into its lane slice of the (N,C) VMEM scratch.
    # No (N,3C)->(3H,N,hd) or (H,N,hd)->(N,C) relayouts (review item).
    for h in range(num_heads):
        q = qkv[:, h * hd:(h + 1) * hd].astype(jnp.bfloat16)               # (N, hd)
        k = qkv[:, C + h * hd:C + (h + 1) * hd].astype(jnp.bfloat16)
        v = qkv[:, 2 * C + h * hd:2 * C + (h + 1) * hd].astype(jnp.bfloat16)
        # q @ k^T as an NT dot_general (no materialized transpose), f32 accumulation.
        s = jax.lax.dot_general(q, k, (((1,), (1,)), ((), ())),
                                preferred_element_type=jnp.float32) * scale  # (N, N)
        if key_mask is not None:
            s = jnp.where(key_mask, -1e30, s)
        s = s - jnp.max(s, axis=-1, keepdims=True)
        e = jnp.exp(s)
        p = e * pl.reciprocal(jnp.sum(e, axis=-1, keepdims=True), approx=True)
        attn_ref[:, h * hd:(h + 1) * hd] = jnp.dot(
            p.astype(jnp.bfloat16), v, preferred_element_type=jnp.float32)   # (N, hd)

    attn = jnp.dot(attn_ref[...].astype(jnp.bfloat16), proj_w_ref[...],
                   preferred_element_type=jnp.float32) + proj_b_ref[...]
    y = x + attn                                        # residual 1 (kept in f32)

    # ---------------- MLP half ----------------
    yn = _layernorm(y, ln2_w_ref[...], ln2_b_ref[...])
    h1 = _gelu(jnp.dot(yn.astype(jnp.bfloat16), fc1_w_ref[...],
                       preferred_element_type=jnp.float32) + fc1_b_ref[...])
    h2 = jnp.dot(h1.astype(jnp.bfloat16), fc2_w_ref[...],
                 preferred_element_type=jnp.float32) + fc2_b_ref[...]
    o_ref[0] = y + h2                                   # residual 2


def block_forward(x, blk, num_heads, n_valid):
    B, N, C = x.shape
    hidden = blk["fc1_w"].shape[1]
    hd = C // num_heads
    scale = hd ** (-0.5)
    kernel = partial(_block_kernel, num_heads=num_heads, scale=scale, n_valid=n_valid)

    # Honest per-step VMEM footprint (double-buffered residual blocks and weights,
    # plus the f32 in-kernel intermediates), used to size vmem_limit_bytes.
    w_bytes = (C * 3 * C + C * C + C * hidden + hidden * C) * 2     # bf16 weights
    working = (
        4 * N * C * 4            # x in + out blocks, double-buffered (f32)
        + 2 * w_bytes            # weights (conservatively counted double-buffered)
        + N * 3 * C * 4          # qkv (f32)
        + N * C * 4              # attention scratch (f32)
        + 3 * N * N * 4          # one head's scores / exp / probs (f32)
        + 2 * N * hidden * 4     # fc1 activation + GELU (f32)
        + 4 * N * C * 4          # LayerNorm temps / residuals (f32)
    )
    cost = pl.CostEstimate(
        flops=B * 2 * N * (3 * C * C + 2 * N * C + C * C + 2 * C * hidden),
        transcendentals=B * (num_heads * N * N + N * hidden),
        bytes_accessed=B * 2 * N * C * 4 + w_bytes,
    )
    # TODO(synk): for ViT-H-class dims on v7x (64 MiB VMEM) re-split attention/MLP or
    # tile the MLP over token rows; fused footprint fits comfortably up to ViT-L.
    return pl.pallas_call(
        kernel,
        out_shape=jax.ShapeDtypeStruct((B, N, C), jnp.float32),
        grid=(B,),
        in_specs=[
            pl.BlockSpec((1, N, C), lambda b: (b, 0, 0)),
            _full((1, C)), _full((1, C)),
            _full((C, 3 * C)), _full((1, 3 * C)),
            _full((C, C)), _full((1, C)),
            _full((1, C)), _full((1, C)),
            _full((C, hidden)), _full((1, hidden)),
            _full((hidden, C)), _full((1, C)),
        ],
        out_specs=pl.BlockSpec((1, N, C), lambda b: (b, 0, 0)),
        scratch_shapes=[pltpu.VMEM((N, C), jnp.float32)],
        compiler_params=_cparams(("parallel",), working),
        cost_estimate=cost,
    )(x, blk["ln1_w"], blk["ln1_b"], blk["qkv_w"], blk["qkv_b"],
      blk["proj_w"], blk["proj_b"], blk["ln2_w"], blk["ln2_b"],
      blk["fc1_w"], blk["fc1_b"], blk["fc2_w"], blk["fc2_b"])


# ----------------------------------------------------------------------------
# kernel 3: final LayerNorm on the CLS token + classification head
# (only the CLS row is passed in — no (B, N, C) DMA)
# ----------------------------------------------------------------------------
def _head_kernel(cls_ref, ln_w_ref, ln_b_ref, hw_ref, hb_ref, o_ref):
    cls = _layernorm(cls_ref[...], ln_w_ref[...], ln_b_ref[...])
    o_ref[...] = jnp.dot(cls.astype(jnp.bfloat16), hw_ref[...],
                         preferred_element_type=jnp.float32) + hb_ref[...]


def head_forward(cls, ln_w, ln_b, hw, hb):
    B, C = cls.shape
    nc = hw.shape[1]
    working = 2 * B * C * 4 + 2 * C * nc * 2 + 2 * B * nc * 4
    return pl.pallas_call(
        _head_kernel,
        out_shape=jax.ShapeDtypeStruct((B, nc), jnp.float32),
        grid=(1,),
        in_specs=[_full((B, C)), _full((1, C)), _full((1, C)),
                  _full((C, nc)), _full((1, nc))],
        out_specs=_full((B, nc)),
        compiler_params=_cparams(("arbitrary",), working),
    )(cls, ln_w, ln_b, hw, hb)


# ----------------------------------------------------------------------------
# parameters (deterministic synthetic init; torch's trunc_normal/kaiming replaced
# by plain scaled normals since this is a synthetic kernel, not a checkpoint).
# Matmul weights are stored pre-cast to bf16; accumulation stays f32 in-kernel.
# ----------------------------------------------------------------------------
def init_params(key, *, img_size, patch_size, in_c, embed_dim, depth, num_heads,
                mlp_ratio, num_classes):
    grid = img_size // patch_size
    num_patches = grid * grid
    hidden = int(embed_dim * mlp_ratio)
    n_tokens = num_patches + 1  # + cls token

    keys = iter(jax.random.split(key, 4 + depth * 4))

    def nrm(k, shape, std, dtype=jnp.float32):
        return (std * jax.random.normal(k, shape)).astype(dtype)

    params = {}
    # Conv2d(in_c, embed_dim, k=patch, stride=patch) == matmul over flattened patches.
    conv_w = nrm(next(keys), (embed_dim, in_c, patch_size, patch_size), 0.02)
    params["patch_w"] = conv_w.reshape(embed_dim, -1).T.astype(jnp.bfloat16)  # (in_c*p*p, E)
    params["patch_b"] = jnp.zeros((1, embed_dim), jnp.float32)
    params["cls_token"] = nrm(next(keys), (1, 1, embed_dim), 0.02)
    params["pos_embed"] = nrm(next(keys), (1, n_tokens, embed_dim), 0.02)

    blocks = []
    for _ in range(depth):
        blocks.append({
            "ln1_w": jnp.ones((1, embed_dim), jnp.float32),
            "ln1_b": jnp.zeros((1, embed_dim), jnp.float32),
            # default torch column order [q_h0..q_hH | k_h0.. | v_h0..]: per-head
            # slices are already contiguous static lane slices, no host permutation needed
            "qkv_w": nrm(next(keys), (embed_dim, 3 * embed_dim), 0.01, jnp.bfloat16),
            "qkv_b": jnp.zeros((1, 3 * embed_dim), jnp.float32),   # qkv_bias=True
            "proj_w": nrm(next(keys), (embed_dim, embed_dim), 0.01, jnp.bfloat16),
            "proj_b": jnp.zeros((1, embed_dim), jnp.float32),
            "ln2_w": jnp.ones((1, embed_dim), jnp.float32),
            "ln2_b": jnp.zeros((1, embed_dim), jnp.float32),
            "fc1_w": nrm(next(keys), (embed_dim, hidden), 0.01, jnp.bfloat16),
            "fc1_b": jnp.zeros((1, hidden), jnp.float32),
            "fc2_w": nrm(next(keys), (hidden, embed_dim), 0.01, jnp.bfloat16),
            "fc2_b": jnp.zeros((1, embed_dim), jnp.float32),
        })
    params["blocks"] = blocks

    params["norm_w"] = jnp.ones((1, embed_dim), jnp.float32)
    params["norm_b"] = jnp.zeros((1, embed_dim), jnp.float32)
    params["head_w"] = nrm(next(keys), (embed_dim, num_classes), 0.01, jnp.bfloat16)
    params["head_b"] = jnp.zeros((1, num_classes), jnp.float32)
    return params


# ----------------------------------------------------------------------------
# full forward pass (representation_size=None, distilled=False, eval mode)
# ----------------------------------------------------------------------------
def vit_forward(params, x, *, patch_size, num_heads):
    B, Cin, H, W = x.shape
    p = patch_size
    gh, gw = H // p, W // p
    E = params["patch_w"].shape[1]

    # PatchEmbed: exact equivalent of Conv2d(k=p, stride=p) + flatten(2).transpose(1,2)
    # TODO(synk): fold this patch-extract transpose into the patch-embed kernel's
    # BlockSpec/index_map on an NHWC band to avoid one (small) extra HBM round trip.
    patches = (
        x.reshape(B, Cin, gh, p, gw, p)
        .transpose(0, 2, 4, 1, 3, 5)              # (B, gh, gw, Cin, p, p)
        .reshape(B * gh * gw, Cin * p * p)
    )
    tok = matmul_bias(patches.astype(jnp.bfloat16), params["patch_w"], params["patch_b"])
    tok = tok.reshape(B, gh * gw, E)

    # prepend cls token, add positional embedding (pos_drop is identity, p=0)
    cls = jnp.broadcast_to(params["cls_token"], (B, 1, E))
    seq = jnp.concatenate([cls, tok], axis=1) + params["pos_embed"]

    # Pad the token axis to a multiple of 128 (dense MXU M-dim / lane-dense score
    # tiles, per review). Padded key columns are masked inside attention; padded
    # rows are row-independent elsewhere and never feed real outputs.
    n_valid = seq.shape[1]
    n_pad = _round_up(n_valid, 128)
    if n_pad != n_valid:
        seq = jnp.pad(seq, ((0, 0), (0, n_pad - n_valid), (0, 0)))

    # fused transformer blocks (one pallas_call per Block, residual stream stays f32)
    for blk in params["blocks"]:
        seq = block_forward(seq, blk, num_heads, n_valid)

    # final norm + pre_logits(Identity) + head on the CLS token only
    return head_forward(seq[:, 0, :], params["norm_w"], params["norm_b"],
                        params["head_w"], params["head_b"])


# ----------------------------------------------------------------------------
if __name__ == "__main__":
    cfg = dict(
        img_size=16, patch_size=8, in_c=3, embed_dim=32, depth=2,
        num_heads=4, mlp_ratio=4.0, num_classes=10,
    )
    key = jax.random.PRNGKey(0)
    pkey, xkey = jax.random.split(key)
    params = init_params(pkey, **cfg)

    # NCHW image input, like the PyTorch module
    x = jax.random.normal(xkey, (2, cfg["in_c"], cfg["img_size"], cfg["img_size"]),
                          dtype=jnp.float32)

    logits = vit_forward(params, x, patch_size=cfg["patch_size"],
                         num_heads=cfg["num_heads"])
    jax.block_until_ready(logits)
    assert logits.shape == (2, cfg["num_classes"]), logits.shape
    print("KERNEL_OK")
</pallas_src>

<mosaic_0001>
module attributes {stable_mosaic.version = 11 : i64} {
  func.func @_matmul_bias_kernel(%arg0: i32, %arg1: memref<16x192xbf16, #tpu.memory_space<vmem>>, %arg2: memref<192x32xbf16, #tpu.memory_space<vmem>>, %arg3: memref<1x32xf32, #tpu.memory_space<vmem>>, %arg4: memref<16x32xf32, #tpu.memory_space<vmem>>) attributes {dimension_semantics = [#tpu.dimension_semantics<parallel>], iteration_bounds = array<i64: 1>, scalar_prefetch = 0 : i64, scratch_operands = 0 : i64, tpu.core_type = #tpu.core_type<tc>, window_params = [{transform_indices = @transform_0, window_bounds = array<i64: 16, 192>}, {pipeline_mode = #tpu.pipeline_mode<synchronous>, transform_indices = @transform_1, window_bounds = array<i64: 192, 32>}, {pipeline_mode = #tpu.pipeline_mode<synchronous>, transform_indices = @transform_2, window_bounds = array<i64: 1, 32>}, {transform_indices = @transform_3, window_bounds = array<i64: 16, 32>}]} {
    %c0 = arith.constant 0 : index
    %c0_0 = arith.constant 0 : index
    %0 = vector.load %arg1[%c0, %c0_0] : memref<16x192xbf16, #tpu.memory_space<vmem>>, vector<16x192xbf16>
    %c0_1 = arith.constant 0 : index
    %c0_2 = arith.constant 0 : index
    %1 = vector.load %arg2[%c0_1, %c0_2] : memref<192x32xbf16, #tpu.memory_space<vmem>>, vector<192x32xbf16>
    %cst = arith.constant dense<0.000000e+00> : vector<16x32xf32>
    %2 = tpu.matmul %0, %1, %cst {dimension_numbers = #tpu.dot_dimension_numbers<[1], [0], [0], [1], [0, 0, 1, 1], [], []>} : vector<16x192xbf16>, vector<192x32xbf16>, vector<16x32xf32> -> vector<16x32xf32>
    %c0_3 = arith.constant 0 : index
    %c0_4 = arith.constant 0 : index
    %3 = vector.load %arg3[%c0_3, %c0_4] : memref<1x32xf32, #tpu.memory_space<vmem>>, vector<1x32xf32>
    %4 = vector.broadcast %3 : vector<1x32xf32> to vector<16x32xf32>
    %5 = arith.addf %2, %4 : vector<16x32xf32>
    %c0_5 = arith.constant 0 : index
    %c0_6 = arith.constant 0 : index
    %6 = vector.load %arg4[%c0_5, %c0_6] : memref<16x32xf32, #tpu.memory_space<vmem>>, vector<16x32xf32>
    tpu.vector_store %arg4[%c0_5, %c0_6], %5 {strides = array<i32>} : memref<16x32xf32, #tpu.memory_space<vmem>>, vector<16x32xf32>,
    return
  }
  func.func @transform_0(%arg0: i32) -> (i32, i32) {
    %c0_i32 = arith.constant 0 : i32
    %c0_i32_0 = arith.constant 0 : i32
    return %arg0, %c0_i32 : i32, i32
  }
  func.func @transform_1(%arg0: i32) -> (i32, i32) {
    %c0_i32 = arith.constant 0 : i32
    %c0_i32_0 = arith.constant 0 : i32
    %c0_i32_1 = arith.constant 0 : i32
    return %c0_i32, %c0_i32_0 : i32, i32
  }
  func.func @transform_2(%arg0: i32) -> (i32, i32) {
    %c0_i32 = arith.constant 0 : i32
    %c0_i32_0 = arith.constant 0 : i32
    %c0_i32_1 = arith.constant 0 : i32
    return %c0_i32, %c0_i32_0 : i32, i32
  }
  func.func @transform_3(%arg0: i32) -> (i32, i32) {
    %c0_i32 = arith.constant 0 : i32
    %c0_i32_0 = arith.constant 0 : i32
    return %arg0, %c0_i32 : i32, i32
  }
}

</mosaic_0001>

<llo_original>
// kernel: tpu_custom_call.1
$region0: #{tpu_custom_call.1}
  #allocation0 [shape = 'u32[]', space=smem, size = 0x4, offset = 0x4, fixed_abs, tag = 'smem constant byte address 0x4 - core index']
  #allocation1 [shape = 'u32[144,128]{1,0:T(1,128)}', space=vmem, size = 0x12000, scoped, tag = 'internal scratch']
  %s0 = inlined_call_operand.vmem [shape: bf16[16,192], index: 0, kind: input, shape index: {}]
  %s1 = inlined_call_operand.vmem [shape: bf16[192,32], index: 1, kind: input, shape index: {}]
  %s2 = inlined_call_operand.vmem [shape: f32[1,32], index: 2, kind: input, shape index: {}]
  %s3 = inlined_call_operand.hbm [shape: f32[16,32], index: 3, kind: output, shape index: {}]
  %s4 = sld [smem:[#allocation0]]
  $region22: #{tpu_custom_call.1} parent=0
    _
  %s6 = ssub.s32 1, %s4
  %s7 = scalar_select 0, %s6, %s4
  $region1: #{tpu_custom_call.1} parent=0
    #allocation2 [shape = 'u8[8192]{0}', space=vmem, size = 0x2000, scoped, tag = 'output window, operand 0, single buffered']
    #allocation3 [shape = 's32[1]{0}', space=sflag, size = 0x4, scoped, tag = 'scoped memory for tpu_custom_call.1']
    %8 = vsyncpa [#allocation3], 0
    // Predicated region
    $region2: #{tpu_custom_call.1} parent=1 // pred_check
      _
    $region3: #{tpu_custom_call.1} parent=1 // pred_check_branch
      %10 = sbr.rel (0) target = $region5
    $region4: #{tpu_custom_call.1} parent=1 // pred_region
      _
    $region5: #{tpu_custom_call.1} parent=1 // pred_fallthru
      _
    // Predicated region
    $region6: #{tpu_custom_call.1} parent=1 // pred_check
      _
    $region7: #{tpu_custom_call.1} parent=1 // pred_check_branch
      %12 = sbr.rel (0) target = $region9
    $region8: #{tpu_custom_call.1} parent=1 // pred_region
      _
    $region9: #{tpu_custom_call.1} parent=1 // pred_fallthru
      _
    // Predicated region
    $region10: #{tpu_custom_call.1} parent=1 // pred_check
      _
    $region11: #{tpu_custom_call.1} parent=1 // pred_check_branch
      %14 = sbr.rel (0) target = $region13
    $region12: #{tpu_custom_call.1} parent=1 // pred_region
      _
    $region13: #{tpu_custom_call.1} parent=1 // pred_fallthru
      _
    %v16 = vld [vmem:[%s0] sm:$0xff]
    %v17 = vld [vmem:[%s0 + $0x8] sm:$0xff]
    %v18 = vld [vmem:[%s1] sm:$0xf]
    %v19 = vld [vmem:[%s1 + $0x4] sm:$0xf]
    %v20 = vld [vmem:[%s1 + $0x8] sm:$0xf]
    %v21 = vld [vmem:[%s1 + $0xc] sm:$0xf]
    %v22 = vld [vmem:[%s1 + $0x10] sm:$0xf]
    %v23 = vld [vmem:[%s1 + $0x14] sm:$0xf]
    %v24 = vld [vmem:[%s1 + $0x18] sm:$0xf]
    %v25 = vld [vmem:[%s1 + $0x1c] sm:$0xf]
    %v26 = vld [vmem:[%s1 + $0x20] sm:$0xf]
    %v27 = vld [vmem:[%s1 + $0x24] sm:$0xf]
    %v28 = vld [vmem:[%s1 + $0x28] sm:$0xf]
    %v29 = vld [vmem:[%s1 + $0x2c] sm:$0xf]
    %v30 = vld [vmem:[%s1 + $0x30] sm:$0xf]
    %v31 = vld [vmem:[%s1 + $0x34] sm:$0xf]
    %v32 = vld [vmem:[%s1 + $0x38] sm:$0xf]
    %v33 = vld [vmem:[%s1 + $0x3c] sm:$0xf]
    %v34 = vld [vmem:[%s1 + $0x40] sm:$0xf]
    %v35 = vld [vmem:[%s1 + $0x44] sm:$0xf]
    %v36 = vld [vmem:[%s1 + $0x48] sm:$0xf]
    %v37 = vld [vmem:[%s1 + $0x4c] sm:$0xf]
    %v38 = vld [vmem:[%s1 + $0x50] sm:$0xf]
    %v39 = vld [vmem:[%s1 + $0x54] sm:$0xf]
    %v40 = vld [vmem:[%s1 + $0x58] sm:$0xf]
    %v41 = vld [vmem:[%s1 + $0x5c] sm:$0xf]
    %v42 = vld [vmem:[%s2] sm:$0x1]
    %v44 = vlaneseq
    %v45 = vshrl.u32 %v44, 7
    %v46 = vsub.s32 0, %v45
    %v47 = vrot.slane %v42, %v46
    %v51 = vunpack.c.l.b16 %v16
    %v52 = vunpack.c.h.b16 %v16
    %v53 = vunpack.c.l.b16 %v17
    %v54 = vunpack.c.h.b16 %v17
    %v55 = vpack.c.b16 %v53, %v51
    %v56 = vpack.c.b16 %v54, %v52
    %v82 = vunpack.c.l.b16 %v18
    %v83 = vunpack.c.l.b16 %v19
    %v84 = vunpack.c.l.b16 %v20
    %v85 = vunpack.c.l.b16 %v21
    %v86 = vunpack.c.l.b16 %v22
    %v87 = vunpack.c.l.b16 %v23
    %v88 = vunpack.c.l.b16 %v24
    %v89 = vunpack.c.l.b16 %v25
    %v90 = vunpack.c.l.b16 %v26
    %v91 = vunpack.c.l.b16 %v27
    %v92 = vunpack.c.l.b16 %v28
    %v93 = vunpack.c.l.b16 %v29
    %v94 = vunpack.c.l.b16 %v30
    %v95 = vunpack.c.l.b16 %v31
    %v96 = vunpack.c.l.b16 %v32
    %v97 = vunpack.c.l.b16 %v33
    %v98 = vunpack.c.l.b16 %v34
    %v99 = vunpack.c.l.b16 %v35
    %v100 = vunpack.c.l.b16 %v36
    %v101 = vunpack.c.l.b16 %v37
    %v102 = vunpack.c.l.b16 %v38
    %v103 = vunpack.c.l.b16 %v39
    %v104 = vunpack.c.l.b16 %v40
    %v105 = vunpack.c.l.b16 %v41
    %v106 = vpack.c.b16 %v83, %v82
    %v107 = vpack.c.b16 %v85, %v84
    %v108 = vpack.c.b16 %v87, %v86
    %v109 = vpack.c.b16 %v89, %v88
    %v110 = vpack.c.b16 %v91, %v90
    %v111 = vpack.c.b16 %v93, %v92
    %v112 = vpack.c.b16 %v95, %v94
    %v113 = vpack.c.b16 %v97, %v96
    %v114 = vpack.c.b16 %v99, %v98
    %v115 = vpack.c.b16 %v101, %v100
    %v116 = vpack.c.b16 %v103, %v102
    %v117 = vpack.c.b16 %v105, %v104
    %vm130 = vcmask 523264
    %v132 = vsel %vm130, %v56, 0
    %134 = vmatprep.subr.bf16.mxu0 0
    %135 = vmatpush1.bf16.msra.mxu0 %v113
    %136 = vmatprep.subr.bf16.mxu0 0
    %137 = vmatpush1.bf16.msra.mxu0 %v112
    %138 = vmatprep.subr.bf16.mxu0 0
    %139 = vmatpush1.bf16.msra.mxu0 %v111
    %140 = vmatprep.subr.bf16.mxu0 0
    %141 = vmatpush1.bf16.msra.mxu0 %v110
    %142 = vmatprep.subr.bf16.mxu0 0
    %143 = vmatpush1.bf16.msra.mxu0 %v109
    %144 = vmatprep.subr.bf16.mxu0 0
    %145 = vmatpush1.bf16.msra.mxu0 %v108
    %146 = vmatprep.subr.bf16.mxu0 0
    %147 = vmatpush1.bf16.msra.mxu0 %v107
    %148 = vmatprep.subr.bf16.mxu0 0
    %149 = vmatpush1.bf16.msra.mxu0 %v106
    %150 = vmatprep.subr.bf16.mxu0 0
    %151 = vmatpush2.bf16.msra.mxu0 0
    %152 = vmatprep.subr.bf16.mxu0 0
    %153 = vmatpush2.bf16.msra.mxu0 0
    %154 = vmatprep.subr.bf16.mxu0 0
    %155 = vmatpush2.bf16.msra.mxu0 0
    %156 = vmatprep.subr.bf16.mxu0 0
    %157 = vmatpush2.bf16.msra.mxu0 0
    %158 = vmatprep.subr.bf16.mxu0 0
    %159 = vmatpush2.bf16.msra.mxu0 %v117
    %160 = vmatprep.subr.bf16.mxu0 0
    %161 = vmatpush2.bf16.msra.mxu0 %v116
    %162 = vmatprep.subr.bf16.mxu0 0
    %163 = vmatpush2.bf16.msra.mxu0 %v115
    %164 = vmatprep.subr.bf16.mxu0 0
    %165 = vmatpush2.bf16.msra.mxu0 %v114
    %166 = vmatprep.mubr.bf16.mxu0 %v132
    %167 = vmatmul.mubr.bf16.gmra.mxu0 %v55
    %v168 = vpop.f32.mrf.mxu0
    %v169 = vadd.f32 %v47, %v168
    %v170 = vpop.f32.mrf.mxu0
    %v171 = vpop.f32.mrf.mxu0
    %v172 = vadd.f32 %v47, %v171
    %v173 = vpop.f32.mrf.mxu0
    %174 = vdwg.mxu0
    %vm175 = vcmask 261120
    %176 = vst.msk [vmem:[#allocation2] sm:$0xff] %vm175, %v169
    %177 = vst.msk [vmem:[#allocation2 + $0x8] sm:$0xff] %vm175, %v172
    // Predicated region
    $region14: #{tpu_custom_call.1} parent=1 // pred_check
      _
    $region15: #{tpu_custom_call.1} parent=1 // pred_check_branch
      %179 = sbr.rel (0) target = $region17
    $region16: #{tpu_custom_call.1} parent=1 // pred_region
      %s181 = ssub.s32 256, 256
      %182 = vsyncadd [#allocation3], %s181
      %s183 = sshll.u32 [#allocation2], 4
      %s184 = int_to_ptr.vmem [resolvable:$true] %s183
      %189 = dma.vmem_to_hbm [thread:$0]  %s184, 256, %s3, [#allocation3], 128, 128, 8
    $region17: #{tpu_custom_call.1} parent=1 // pred_fallthru
      _
    // Predicated region
    $region18: #{tpu_custom_call.1} parent=1 // pred_check
      _
    $region19: #{tpu_custom_call.1} parent=1 // pred_check_branch
      %191 = sbr.rel (0) target = $region21
    $region20: #{tpu_custom_call.1} parent=1 // pred_region
      %192 = dma.done [#allocation3], 256
    $region21: #{tpu_custom_call.1} parent=1 // pred_fallthru
      _
    %193 = vsyncpa [#allocation3], 1

</llo_original>
